<compile_context>
chip_gen: v7x
topology: tpu7x:2x2x1
jax: 0.10.0
libtpu: 0.0.40
codegen_flags: <defaults>
</compile_context>

<pallas_src>
import functools
import math

import jax
import jax.numpy as jnp
from jax.experimental import pallas as pl
from jax.experimental.pallas import tpu as pltpu


def _round_up(x, m):
    return ((x + m - 1) // m) * m


def _label_smoothing_kernel(tgt_ref, logp_ref, loss_ref, acc_ref, *,
                            confidence, smoothing_value, log_confidence,
                            log_smoothing, padding_idx, pad_col, vocab_size, tv):
    i = pl.program_id(0)
    j = pl.program_id(1)

    @pl.when(jnp.logical_and(i == 0, j == 0))
    def _init():
        acc_ref[...] = jnp.zeros_like(acc_ref)

    tgt = tgt_ref[...]                              # (TB, 1) int32
    logp = logp_ref[...].astype(jnp.float32)        # (TB, TV); no-op if already f32

    # Global vocab index of every lane in this tile.
    col = jax.lax.broadcasted_iota(jnp.int32, logp.shape, 1) + j * tv

    is_tgt = col == tgt                             # scatter_ column (confidence)

    term_tgt = confidence * (log_confidence - logp)
    term_smooth = smoothing_value * (log_smoothing - logp)
    contrib = jnp.where(is_tgt, term_tgt, term_smooth)

    # model_prob == 0 entries contribute 0 to kl_div:
    #   * whole row when target == padding_idx          (masked_fill_)
    #   * padding column, unless the scatter hit it     (one_hot[padding_idx]=0)
    #   * wrapper-added padding columns (col >= V)
    keep = jnp.logical_and(
        tgt != padding_idx,
        jnp.logical_and(jnp.logical_or(is_tgt, col != pad_col),
                        col < vocab_size))
    contrib = jnp.where(keep, contrib, 0.0)

    partial = jnp.sum(contrib, axis=1, keepdims=True)   # (TB, 1) cross-lane reduce
    partial = jnp.sum(partial, axis=0, keepdims=True)   # (1, 1)  cross-sublane reduce
    acc_ref[...] += partial

    @pl.when(jnp.logical_and(i == pl.num_programs(0) - 1,
                             j == pl.num_programs(1) - 1))
    def _finalize():
        loss_ref[...] = acc_ref[...]


def label_smoothing_loss(output, target, *, label_smoothing, tgt_vocab_size,
                         ignore_index=-100):
    """output: (B, V) log-probs, target: (B,) int. Returns scalar f32 loss."""
    assert 0.0 < label_smoothing <= 1.0
    B, V = output.shape
    assert V == tgt_vocab_size
    confidence = 1.0 - label_smoothing
    smoothing_value = label_smoothing / (tgt_vocab_size - 2)
    # one_hot[padding_idx] = 0 uses python-style (possibly negative) indexing.
    pad_col = ignore_index % tgt_vocab_size

    # Lane-dense, VMEM-budgeted tiling: TV multiple of 128, TB multiple of 8,
    # tile <= 256*2048*4B = 2 MiB (x2 double-buffer) -> safe on v5e/v6e/v7x.
    TV = min(2048, _round_up(V, 128))
    TB = min(256, _round_up(B, 8))
    B_pad = _round_up(B, TB)
    V_pad = _round_up(V, TV)

    logp = output
    if (B_pad, V_pad) != (B, V):
        logp = jnp.pad(logp, ((0, B_pad - B), (0, V_pad - V)))
    tgt = target.astype(jnp.int32)
    if B_pad != B:
        # Padded rows marked as ignore_index -> contribute exactly 0.
        tgt = jnp.pad(tgt, (0, B_pad - B), constant_values=ignore_index)
    tgt2d = tgt.reshape(B_pad, 1)

    nb = B_pad // TB
    nv = V_pad // TV

    kernel = functools.partial(
        _label_smoothing_kernel,
        confidence=confidence,
        smoothing_value=smoothing_value,
        log_confidence=(math.log(confidence) if confidence > 0.0 else 0.0),
        log_smoothing=math.log(smoothing_value),
        padding_idx=ignore_index,
        pad_col=pad_col,
        vocab_size=V,
        tv=TV,
    )

    loss = pl.pallas_call(
        kernel,
        out_shape=jax.ShapeDtypeStruct((1, 1), jnp.float32),
        grid_spec=pltpu.PrefetchScalarGridSpec(
            num_scalar_prefetch=0,
            grid=(nb, nv),
            in_specs=[
                pl.BlockSpec((TB, 1), lambda i, j: (i, 0)),     # targets (per row tile)
                pl.BlockSpec((TB, TV), lambda i, j: (i, j)),    # log-probs tile
            ],
            out_specs=pl.BlockSpec((1, 1), lambda i, j: (0, 0)),
            scratch_shapes=[pltpu.VMEM((1, 1), jnp.float32)],
        ),
        compiler_params=pltpu.CompilerParams(
            # Whole grid feeds a single accumulator -> reduction on both axes.
            dimension_semantics=("arbitrary", "arbitrary"),
        ),
    )(tgt2d, logp)

    return loss[0, 0]


class LabelSmoothingLoss:
    """Drop-in mirror of the PyTorch module's constructor/forward."""

    def __init__(self, label_smoothing, tgt_vocab_size, ignore_index=-100):
        assert 0.0 < label_smoothing <= 1.0
        self.label_smoothing = label_smoothing
        self.tgt_vocab_size = tgt_vocab_size
        self.ignore_index = ignore_index

    def __call__(self, output, target):
        return label_smoothing_loss(
            output, target,
            label_smoothing=self.label_smoothing,
            tgt_vocab_size=self.tgt_vocab_size,
            ignore_index=self.ignore_index)


def _reference(output, target, label_smoothing, vocab_size, ignore_index):
    """Pure-JAX replica of the PyTorch forward (scatter_ + masked_fill_ + kl_div sum)."""
    confidence = 1.0 - label_smoothing
    sv = label_smoothing / (vocab_size - 2)
    one_hot = jnp.full((vocab_size,), sv, dtype=jnp.float32)
    one_hot = one_hot.at[ignore_index].set(0.0)
    bsz = target.shape[0]
    model_prob = jnp.tile(one_hot[None, :], (bsz, 1))
    model_prob = model_prob.at[jnp.arange(bsz), target].set(confidence)
    model_prob = jnp.where((target == ignore_index)[:, None], 0.0, model_prob)
    safe_log = jnp.log(jnp.where(model_prob > 0, model_prob, 1.0))
    pointwise = jnp.where(model_prob > 0,
                          model_prob * (safe_log - output.astype(jnp.float32)), 0.0)
    return jnp.sum(pointwise)


if __name__ == "__main__":
    key = jax.random.PRNGKey(0)
    k1, k2, k3, k4, k5 = jax.random.split(key, 5)

    # Case 1: aligned small shapes (B=8, V=512), ignore_index = PAD token 0.
    B, V = 8, 512
    ls, pad = 0.1, 0
    logits = jax.random.normal(k1, (B, V), dtype=jnp.float32)
    log_probs = jax.nn.log_softmax(logits, axis=-1)
    target = jax.random.randint(k2, (B,), 0, V, dtype=jnp.int32)
    target = target.at[1].set(pad)                       # one ignored row
    crit = LabelSmoothingLoss(ls, V, ignore_index=pad)
    loss = jax.block_until_ready(crit(log_probs, target))
    ref = _reference(log_probs, target, ls, V, pad)
    assert jnp.allclose(loss, ref, atol=1e-3, rtol=1e-4), (loss, ref)

    # Case 2: unaligned shapes (B=5, V=300) -> exercises row/col padding + masking.
    B2, V2, ls2, pad2 = 5, 300, 0.2, 1
    log_probs2 = jax.nn.log_softmax(jax.random.normal(k3, (B2, V2), jnp.float32), -1)
    target2 = jnp.array([3, pad2, 299, 7, 0], dtype=jnp.int32)
    loss2 = jax.block_until_ready(
        label_smoothing_loss(log_probs2, target2, label_smoothing=ls2,
                             tgt_vocab_size=V2, ignore_index=pad2))
    ref2 = _reference(log_probs2, target2, ls2, V2, pad2)
    assert jnp.allclose(loss2, ref2, atol=1e-3, rtol=1e-4), (loss2, ref2)

    # Case 3: multi-tile grid (nb=2, nv=2) -> exercises cross-step accumulation.
    B3, V3, ls3, pad3 = 272, 2600, 0.15, 2
    log_probs3 = jax.nn.log_softmax(jax.random.normal(k4, (B3, V3), jnp.float32), -1)
    target3 = jax.random.randint(k5, (B3,), 0, V3, dtype=jnp.int32)
    target3 = target3.at[0].set(pad3).at[100].set(pad3)
    loss3 = jax.block_until_ready(
        label_smoothing_loss(log_probs3, target3, label_smoothing=ls3,
                             tgt_vocab_size=V3, ignore_index=pad3))
    ref3 = _reference(log_probs3, target3, ls3, V3, pad3)
    assert jnp.allclose(loss3, ref3, atol=1e-2, rtol=1e-4), (loss3, ref3)

    print("KERNEL_OK")
</pallas_src>

<mosaic_0001>
module attributes {stable_mosaic.version = 11 : i64} {
  func.func @_label_smoothing_kernel(%arg0: i32, %arg1: i32, %arg2: memref<8x1xi32, #tpu.memory_space<vmem>>, %arg3: memref<8x512xf32, #tpu.memory_space<vmem>>, %arg4: memref<1x1xf32, #tpu.memory_space<vmem>>, %arg5: memref<1x1xf32, #tpu.memory_space<vmem>>) attributes {dimension_semantics = [#tpu.dimension_semantics<arbitrary>, #tpu.dimension_semantics<arbitrary>], iteration_bounds = array<i64: 1, 1>, scalar_prefetch = 0 : i64, scratch_operands = 1 : i64, tpu.core_type = #tpu.core_type<tc>, window_params = [{transform_indices = @transform_0, window_bounds = array<i64: 8, 1>}, {transform_indices = @transform_1, window_bounds = array<i64: 8, 512>}, {pipeline_mode = #tpu.pipeline_mode<synchronous>, transform_indices = @transform_2, window_bounds = array<i64: 1, 1>}]} {
    %c0_i32 = arith.constant 0 : i32
    %0 = arith.cmpi eq, %arg0, %c0_i32 : i32
    %c0_i32_0 = arith.constant 0 : i32
    %1 = arith.cmpi eq, %arg1, %c0_i32_0 : i32
    %2 = arith.andi %0, %1 : i1
    %3 = arith.extui %2 : i1 to i32
    %c0_i32_1 = arith.constant 0 : i32
    %4 = arith.cmpi ne, %3, %c0_i32_1 : i32
    scf.if %4 {
      %cst_21 = arith.constant 0.000000e+00 : f32
      %46 = vector.broadcast %cst_21 : f32 to vector<1x1xf32>
      %c0_22 = arith.constant 0 : index
      %c0_23 = arith.constant 0 : index
      %47 = vector.load %arg5[%c0_22, %c0_23] : memref<1x1xf32, #tpu.memory_space<vmem>>, vector<1x1xf32>
      tpu.vector_store %arg5[%c0_22, %c0_23], %46 {strides = array<i32>} : memref<1x1xf32, #tpu.memory_space<vmem>>, vector<1x1xf32>,
    } else {
    }
    %c0 = arith.constant 0 : index
    %c0_2 = arith.constant 0 : index
    %5 = vector.load %arg2[%c0, %c0_2] : memref<8x1xi32, #tpu.memory_space<vmem>>, vector<8x1xi32>
    %c0_3 = arith.constant 0 : index
    %c0_4 = arith.constant 0 : index
    %6 = vector.load %arg3[%c0_3, %c0_4] : memref<8x512xf32, #tpu.memory_space<vmem>>, vector<8x512xf32>
    %7 = tpu.iota {dimensions = array<i32: 1>} : vector<8x512xi32>
    %c512_i32 = arith.constant 512 : i32
    %8 = arith.muli %arg1, %c512_i32 : i32
    %9 = vector.broadcast %8 : i32 to vector<8x512xi32>
    %10 = arith.addi %7, %9 : vector<8x512xi32>
    %11 = vector.broadcast %5 : vector<8x1xi32> to vector<8x512xi32>
    %12 = arith.cmpi eq, %10, %11 : vector<8x512xi32>
    %cst = arith.constant -0.105360515 : f32
    %13 = vector.broadcast %cst : f32 to vector<8x512xf32>
    %14 = arith.subf %13, %6 : vector<8x512xf32>
    %cst_5 = arith.constant 0.899999976 : f32
    %15 = vector.broadcast %cst_5 : f32 to vector<8x512xf32>
    %16 = arith.mulf %15, %14 : vector<8x512xf32>
    %cst_6 = arith.constant -8.53699588 : f32
    %17 = vector.broadcast %cst_6 : f32 to vector<8x512xf32>
    %18 = arith.subf %17, %6 : vector<8x512xf32>
    %cst_7 = arith.constant 1.96078428E-4 : f32
    %19 = vector.broadcast %cst_7 : f32 to vector<8x512xf32>
    %20 = arith.mulf %19, %18 : vector<8x512xf32>
    %21 = arith.select %12, %16, %20 : vector<8x512xi1>, vector<8x512xf32>
    %c0_i32_8 = arith.constant 0 : i32
    %22 = vector.broadcast %c0_i32_8 : i32 to vector<8x1xi32>
    %23 = arith.cmpi ne, %5, %22 : vector<8x1xi32>
    %c0_i32_9 = arith.constant 0 : i32
    %24 = vector.broadcast %c0_i32_9 : i32 to vector<8x512xi32>
    %25 = arith.cmpi ne, %10, %24 : vector<8x512xi32>
    %26 = arith.ori %12, %25 : vector<8x512xi1>
    %c512_i32_10 = arith.constant 512 : i32
    %27 = vector.broadcast %c512_i32_10 : i32 to vector<8x512xi32>
    %28 = arith.cmpi slt, %10, %27 : vector<8x512xi32>
    %29 = arith.andi %26, %28 : vector<8x512xi1>
    %30 = vector.broadcast %23 : vector<8x1xi1> to vector<8x512xi1>
    %31 = arith.andi %30, %29 : vector<8x512xi1>
    %cst_11 = arith.constant 0.000000e+00 : f32
    %32 = vector.broadcast %cst_11 : f32 to vector<8x512xf32>
    %33 = arith.select %31, %21, %32 : vector<8x512xi1>, vector<8x512xf32>
    %cst_12 = arith.constant dense<0.000000e+00> : vector<8xf32>
    %34 = vector.multi_reduction <add>, %33, %cst_12 [1] : vector<8x512xf32> to vector<8xf32>
    %35 = vector.shape_cast %34 : vector<8xf32> to vector<8x1xf32>
    %cst_13 = arith.constant dense<0.000000e+00> : vector<1xf32>
    %36 = vector.multi_reduction <add>, %35, %cst_13 [0] : vector<8x1xf32> to vector<1xf32>
    %37 = vector.shape_cast %36 : vector<1xf32> to vector<1x1xf32>
    %c0_14 = arith.constant 0 : index
    %c0_15 = arith.constant 0 : index
    %38 = vector.load %arg5[%c0_14, %c0_15] : memref<1x1xf32, #tpu.memory_space<vmem>>, vector<1x1xf32>
    %39 = arith.addf %38, %37 : vector<1x1xf32>
    %c0_16 = arith.constant 0 : index
    %c0_17 = arith.constant 0 : index
    %40 = vector.load %arg5[%c0_16, %c0_17] : memref<1x1xf32, #tpu.memory_space<vmem>>, vector<1x1xf32>
    tpu.vector_store %arg5[%c0_16, %c0_17], %39 {strides = array<i32>} : memref<1x1xf32, #tpu.memory_space<vmem>>, vector<1x1xf32>,
    %c0_i32_18 = arith.constant 0 : i32
    %41 = arith.cmpi eq, %arg0, %c0_i32_18 : i32
    %c0_i32_19 = arith.constant 0 : i32
    %42 = arith.cmpi eq, %arg1, %c0_i32_19 : i32
    %43 = arith.andi %41, %42 : i1
    %44 = arith.extui %43 : i1 to i32
    %c0_i32_20 = arith.constant 0 : i32
    %45 = arith.cmpi ne, %44, %c0_i32_20 : i32
    scf.if %45 {
      %c0_21 = arith.constant 0 : index
      %c0_22 = arith.constant 0 : index
      %46 = vector.load %arg5[%c0_21, %c0_22] : memref<1x1xf32, #tpu.memory_space<vmem>>, vector<1x1xf32>
      %c0_23 = arith.constant 0 : index
      %c0_24 = arith.constant 0 : index
      %47 = vector.load %arg4[%c0_23, %c0_24] : memref<1x1xf32, #tpu.memory_space<vmem>>, vector<1x1xf32>
      tpu.vector_store %arg4[%c0_23, %c0_24], %46 {strides = array<i32>} : memref<1x1xf32, #tpu.memory_space<vmem>>, vector<1x1xf32>,
    } else {
    }
    return
  }
  func.func @transform_0(%arg0: i32, %arg1: i32) -> (i32, i32) {
    %c0_i32 = arith.constant 0 : i32
    %c0_i32_0 = arith.constant 0 : i32
    return %arg0, %c0_i32 : i32, i32
  }
  func.func @transform_1(%arg0: i32, %arg1: i32) -> (i32, i32) {
    %c0_i32 = arith.constant 0 : i32
    return %arg0, %arg1 : i32, i32
  }
  func.func @transform_2(%arg0: i32, %arg1: i32) -> (i32, i32) {
    %c0_i32 = arith.constant 0 : i32
    %c0_i32_0 = arith.constant 0 : i32
    %c0_i32_1 = arith.constant 0 : i32
    return %c0_i32, %c0_i32_0 : i32, i32
  }
}

</mosaic_0001>

<llo_original>
// kernel: tpu_custom_call.1
$region0: #{tpu_custom_call.1}
  #allocation0 [shape = 'u32[]', space=smem, size = 0x4, offset = 0x4, fixed_abs, tag = 'smem constant byte address 0x4 - core index']
  #allocation1 [shape = 'u32[144,128]{1,0:T(1,128)}', space=vmem, size = 0x12000, scoped, tag = 'internal scratch']
  #allocation2 [shape = 'f32[1,1]{1,0:T(1,128)}', space=vmem, size = 0x200, scoped, tag = 'scratch operand']
  %s0 = inlined_call_operand.vmem [shape: s32[8,1], index: 0, kind: input, shape index: {}]
  %s1 = inlined_call_operand.hbm [shape: f32[8,512], index: 1, kind: input, shape index: {}]
  %s2 = inlined_call_operand.hbm [shape: f32[1,1], index: 2, kind: output, shape index: {}]
  %s3 = sld [smem:[#allocation0]]
  $region30: #{tpu_custom_call.1} parent=0
    _
  %s5 = ssub.s32 1, %s3
  %s6 = scalar_select 0, %s5, %s3
  $region1: #{tpu_custom_call.1} parent=0
    #allocation3 [shape = 'u8[16384]{0}', space=vmem, size = 0x4000, scoped, tag = 'input window, operand 1, single buffered']
    #allocation4 [shape = 's32[1]{0}', space=sflag, size = 0x4, scoped, tag = 'scoped memory for tpu_custom_call.1']
    #allocation5 [shape = 's32[1]{0}', space=sflag, size = 0x4, scoped, tag = 'scoped memory for tpu_custom_call.1']
    #allocation6 [shape = 'u8[512]{0}', space=vmem, size = 0x400, scoped, tag = 'output window, operand 0, single buffered']
    %7 = vsyncpa [#allocation4], 0
    %8 = vsyncpa [#allocation5], 0
    // Predicated region
    $region2: #{tpu_custom_call.1} parent=1 // pred_check
      _
    $region3: #{tpu_custom_call.1} parent=1 // pred_check_branch
      %10 = sbr.rel (0) target = $region5
    $region4: #{tpu_custom_call.1} parent=1 // pred_region
      _
    $region5: #{tpu_custom_call.1} parent=1 // pred_fallthru
      _
    // Predicated region
    $region6: #{tpu_custom_call.1} parent=1 // pred_check
      _
    $region7: #{tpu_custom_call.1} parent=1 // pred_check_branch
      %12 = sbr.rel (0) target = $region9
    $region8: #{tpu_custom_call.1} parent=1 // pred_region
      %s14 = ssub.s32 512, 512
      %15 = vsyncadd [#allocation4], %s14
      %s17 = sshll.u32 [#allocation3], 4
      %s18 = int_to_ptr.vmem [resolvable:$true] %s17
      %20 = dma.hbm_to_vmem [thread:$0]  %s1, 512, %s18, [#allocation4]
    $region9: #{tpu_custom_call.1} parent=1 // pred_fallthru
      _
    // Predicated region
    $region10: #{tpu_custom_call.1} parent=1 // pred_check
      _
    $region11: #{tpu_custom_call.1} parent=1 // pred_check_branch
      %22 = sbr.rel (0) target = $region13
    $region12: #{tpu_custom_call.1} parent=1 // pred_region
      %23 = dma.done [#allocation4], 512
    $region13: #{tpu_custom_call.1} parent=1 // pred_fallthru
      _
    %p24 = scmp.eq.s32.totalorder 0, 0
    %p25 = scmp.eq.s32.totalorder 0, 0
    %p26 = pnand %p24, %p25
    %p27 = pneg %p26
    // Predicated region
    $region14: #{tpu_custom_call.1} parent=1 // pred_check
      _
    $region15: #{tpu_custom_call.1} parent=1 // pred_check_branch
      %29 = sbr.rel (%p26) target = $region17
    $region16: #{tpu_custom_call.1} parent=1 // pred_region
      %vm30 = vcmask 0
      %31 = vst.msk [vmem:[#allocation2] sm:$0x1] %vm30, 0.0
    $region17: #{tpu_custom_call.1} parent=1 // pred_fallthru
      _
    %v32 = vld [vmem:[%s0] sm:$0xff]
    %v33 = vld [vmem:[#allocation3] sm:$0xff]
    %v34 = vld [vmem:[#allocation3 + $0x8] sm:$0xff]
    %v35 = vld [vmem:[#allocation3 + $0x10] sm:$0xff]
    %v36 = vld [vmem:[#allocation3 + $0x18] sm:$0xff]
    %v37 = vlaneseq
    %v38 = vand.u32 %v37, 127
    %v39 = vadd.s32 %v38, 128
    %v40 = vadd.s32 %v38, 256
    %v41 = vadd.s32 %v38, 384
    %s42 = smul.u32 0, 512
    %v43 = vstv %s42
    %v44 = vadd.s32 %v38, %v43
    %v45 = vadd.s32 %v39, %v43
    %v46 = vadd.s32 %v40, %v43
    %v47 = vadd.s32 %v41, %v43
    %48 = vset.pattern.permute.xlu0 0
    %49 = vperm.xlu0 %48, %v32
    %v50 = vpop.permute.xlu0 %49
    %vm51 = vcmp.eq.s32.totalorder %v44, %v50
    %vm52 = vcmp.eq.s32.totalorder %v45, %v50
    %vm53 = vcmp.eq.s32.totalorder %v46, %v50
    %vm54 = vcmp.eq.s32.totalorder %v47, %v50
    %v55 = vsub.f32 -0.105360515, %v33
    %v56 = vsub.f32 -0.105360515, %v34
    %v57 = vsub.f32 -0.105360515, %v35
    %v58 = vsub.f32 -0.105360515, %v36
    %v59 = vmul.f32 %v55, 0.9
    %v60 = vmul.f32 %v56, 0.9
    %v61 = vmul.f32 %v57, 0.9
    %v62 = vmul.f32 %v58, 0.9
    %v63 = vsub.f32 -8.536996, %v33
    %v64 = vsub.f32 -8.536996, %v34
    %v65 = vsub.f32 -8.536996, %v35
    %v66 = vsub.f32 -8.536996, %v36
    %v67 = vmul.f32 %v63, 0.00019607843
    %v68 = vmul.f32 %v64, 0.00019607843
    %v69 = vmul.f32 %v65, 0.00019607843
    %v70 = vmul.f32 %v66, 0.00019607843
    %v71 = vsel %vm51, %v59, %v67
    %v72 = vsel %vm52, %v60, %v68
    %v73 = vsel %vm53, %v61, %v69
    %v74 = vsel %vm54, %v62, %v70
    %vm75 = vcmp.ne.s32.totalorder %v32, 0
    %vm76 = vcmp.ne.s32.totalorder %v44, 0
    %vm77 = vcmp.ne.s32.totalorder %v45, 0
    %vm78 = vcmp.ne.s32.totalorder %v46, 0
    %vm79 = vcmp.ne.s32.totalorder %v47, 0
    %vm80 = vmor %vm51, %vm76
    %vm81 = vmor %vm52, %vm77
    %vm82 = vmor %vm53, %vm78
    %vm83 = vmor %vm54, %vm79
    %vm84 = vcmp.lt.s32.totalorder %v44, 512
    %vm85 = vcmp.lt.s32.totalorder %v45, 512
    %vm86 = vcmp.lt.s32.totalorder %v46, 512
    %vm87 = vcmp.lt.s32.totalorder %v47, 512
    %vm88 = vmand %vm80, %vm84
    %vm89 = vmand %vm81, %vm85
    %vm90 = vmand %vm82, %vm86
    %vm91 = vmand %vm83, %vm87
    %v92 = vsel %vm75, 1, 0
    %93 = vset.pattern.permute.xlu0 0
    %94 = vperm.xlu0 %93, %v92
    %v95 = vpop.permute.xlu0 %94
    %vm96 = vcmp.eq.s32.totalorder %v95, 1
    %vm97 = vmand %vm96, %vm88
    %vm98 = vmand %vm96, %vm89
    %vm99 = vmand %vm96, %vm90
    %vm100 = vmand %vm96, %vm91
    %v101 = vsel %vm97, %v71, 0.0
    %v102 = vsel %vm98, %v72, 0.0
    %v103 = vsel %vm99, %v73, 0.0
    %v104 = vsel %vm100, %v74, 0.0
    %v105 = vadd.f32 %v101, %v102
    %v106 = vadd.f32 %v105, %v103
    %v107 = vadd.f32 %v106, %v104
    %108 = vadd.xlane.f32.xlu0 %v107
    %v109 = vpop.xlane.xlu0 %108
    %v110 = vrot.slane %v109, 4
    %v111 = vadd.f32 %v109, %v110
    %v112 = vrot.slane %v111, 2
    %v113 = vadd.f32 %v111, %v112
    %v114 = vrot.slane %v113, 1
    %v115 = vadd.f32 %v113, %v114
    %v116 = vld [vmem:[#allocation2] sm:$0x1]
    %v117 = vadd.f32 %v116, %v115
    %vm118 = vcmask 0
    %119 = vst.msk [vmem:[#allocation2] sm:$0x1] %vm118, %v117
    // Predicated region
    $region18: #{tpu_custom_call.1} parent=1 // pred_check
      _
    $region19: #{tpu_custom_call.1} parent=1 // pred_check_branch
      %121 = sbr.rel (%p26) target = $region21
    $region20: #{tpu_custom_call.1} parent=1 // pred_region
      %v122 = vld [vmem:[#allocation2] sm:$0x1]
      %123 = vst.msk [vmem:[#allocation6] sm:$0x1] %vm118, %v122
    $region21: #{tpu_custom_call.1} parent=1 // pred_fallthru
      _
    // Predicated region
    $region22: #{tpu_custom_call.1} parent=1 // pred_check
      _
    $region23: #{tpu_custom_call.1} parent=1 // pred_check_branch
      %125 = sbr.rel (0) target = $region25
    $region24: #{tpu_custom_call.1} parent=1 // pred_region
      %s127 = ssub.s32 16, 16
      %128 = vsyncadd [#allocation5], %s127
      %s130 = sshll.u32 [#allocation6], 4
      %s131 = int_to_ptr.vmem [resolvable:$true] %s130
      %133 = dma.vmem_to_hbm [thread:$0]  %s131, 16, %s2, [#allocation5]
    $region25: #{tpu_custom_call.1} parent=1 // pred_fallthru
      _
    // Predicated region
    $region26: #{tpu_custom_call.1} parent=1 // pred_check
      _
    $region27: #{tpu_custom_call.1} parent=1 // pred_check_branch
      %135 = sbr.rel (0) target = $region29
    $region28: #{tpu_custom_call.1} parent=1 // pred_region
      %136 = dma.done [#allocation5], 16
    $region29: #{tpu_custom_call.1} parent=1 // pred_fallthru
      _
    %137 = vsyncpa [#allocation4], 1
    %138 = vsyncpa [#allocation5], 1

</llo_original>
